<compile_context>
chip_gen: v5e
topology: v5e:2x2
jax: 0.10.0
libtpu: 0.0.40
codegen_flags: <defaults>
</compile_context>

<pallas_src>
import jax
import jax.numpy as jnp
from jax.experimental import pallas as pl
from jax.experimental.pallas import tpu as pltpu

PAD = 128          # padded hidden width (sublane/contract dim)
HIDDEN = 100       # true hidden width
IN_DIM = 2
OUT_DIM = 2
OUT_PAD = 16       # layer-5 matmul rows (one bf16 sublane tile)
NUM_LAYERS = 6
W0_COLS = 8        # lane padding for the dedicated layer-0 f32 weight operand


def _cdiv(a, b):
    return -(-a // b)


def mlp_kernel(x_ref, w0_ref, w_ref, b_ref, o_ref):
    # x_ref : (IN_DIM, tb)  f32  -- transposed input tile (features on sublanes)
    # w0_ref: (PAD, 8)      f32  -- layer-0 weight columns, pre-sliced, zero padded
    # w_ref : (5, PAD, PAD) bf16 -- layers 1..5 weights, PyTorch (out,in) layout, zero padded
    # b_ref : (6, PAD, 1)   f32  -- all biases, zero padded
    # o_ref : (OUT_DIM, tb) f32  -- transposed output tile
    xt = x_ref[...]                                        # (2, tb) f32

    # ---- Layer 0: contraction dim is only 2 -> two f32 broadcast FMAs (VPU).
    w0 = w0_ref[...]                                       # (128, 8) f32
    h = (w0[:, 0:1] * xt[0:1, :]
         + w0[:, 1:2] * xt[1:2, :]
         + b_ref[0])                                       # (128, tb) f32
    h = jnp.maximum(h, 0.0)

    # ---- Layers 1..4: full 128x128 bf16 MXU matmuls, f32 acc, bias+ReLU in f32.
    for l in range(1, NUM_LAYERS - 1):
        h = jnp.dot(w_ref[l - 1], h.astype(jnp.bfloat16),
                    preferred_element_type=jnp.float32) + b_ref[l]
        h = jnp.maximum(h, 0.0)

    # ---- Layer 5: only the first 16 (sublane-tile aligned) weight rows matter.
    o = jnp.dot(w_ref[NUM_LAYERS - 2, :OUT_PAD, :], h.astype(jnp.bfloat16),
                preferred_element_type=jnp.float32) + b_ref[NUM_LAYERS - 1, :OUT_PAD]
    o_ref[...] = o[:OUT_DIM, :]                            # lane-dense (2, tb) store


def _tile_plan(n, tb):
    """Balanced 128-multiple batch tiles; keep the grid >=2 and even when
    there is enough work so both v7x TensorCores are used."""
    num_tiles = max(1, _cdiv(n, tb))
    if n >= 2 * PAD:
        if num_tiles == 1:
            num_tiles = 2
        elif num_tiles % 2 == 1:
            num_tiles += 1
    tb_eff = _cdiv(_cdiv(n, num_tiles), PAD) * PAD
    n_pad = num_tiles * tb_eff
    return num_tiles, tb_eff, n_pad


def my_method_forward(x, w0_f32, w_hidden, b_packed, *, tb=2048):
    """x: (N, 2) float32. Returns (N, 2) float32."""
    x = x.astype(jnp.float32)
    n = x.shape[0]
    assert tb % PAD == 0, "batch tile must be a multiple of 128 lanes"

    num_tiles, tb_eff, n_pad = _tile_plan(n, tb)

    # Feature-major input: (N, 2) -> (2, n_pad) via a single pad (no zeros+scatter).
    xt = jnp.pad(x.T, ((0, 0), (0, n_pad - n)))

    flops = n_pad * (2 * IN_DIM * PAD                       # layer 0
                     + (NUM_LAYERS - 2) * 2 * PAD * PAD     # layers 1..4
                     + 2 * OUT_PAD * PAD)                   # layer 5
    bytes_accessed = (IN_DIM * n_pad * 4                    # input
                      + OUT_DIM * n_pad * 4                 # output
                      + w0_f32.size * 4                     # f32 layer-0 weights
                      + w_hidden.size * 2                   # bf16 weights
                      + b_packed.size * 4)                  # f32 biases

    cp_kwargs = dict(dimension_semantics=("parallel",))
    if tb_eff >= 4096:
        # Only needed when pushing very large tiles (v7x VMEM is 64 MiB total).
        cp_kwargs["vmem_limit_bytes"] = 48 * 1024 * 1024
    compiler_params = pltpu.CompilerParams(**cp_kwargs)

    out_t = pl.pallas_call(
        mlp_kernel,
        out_shape=jax.ShapeDtypeStruct((OUT_DIM, n_pad), jnp.float32),
        grid_spec=pltpu.PrefetchScalarGridSpec(
            num_scalar_prefetch=0,
            grid=(num_tiles,),
            in_specs=[
                pl.BlockSpec((IN_DIM, tb_eff), lambda i: (0, i)),            # streaming x
                pl.BlockSpec((PAD, W0_COLS), lambda i: (0, 0)),              # resident layer-0 cols
                pl.BlockSpec((NUM_LAYERS - 1, PAD, PAD), lambda i: (0, 0, 0)),  # resident weights
                pl.BlockSpec((NUM_LAYERS, PAD, 1), lambda i: (0, 0, 0)),     # resident biases
            ],
            out_specs=pl.BlockSpec((OUT_DIM, tb_eff), lambda i: (0, i)),
        ),
        compiler_params=compiler_params,
        cost_estimate=pl.CostEstimate(
            flops=flops, transcendentals=0, bytes_accessed=bytes_accessed),
    )(xt, w0_f32, w_hidden, b_packed)

    # Callers that can consume feature-major output may skip this transpose.
    return out_t[:, :n].T


def init_params(key):
    """Xavier-normal weights (PyTorch (out, in) layout), zero bias.
    Packs:
      w0_f32   : (128, 8)      f32  -- layer-0 weight columns (cols 0..1), zero padded
      w_hidden : (5, 128, 128) bf16 -- layers 1..5, zero padded
      b_packed : (6, 128, 1)   f32  -- all biases, zero padded
    Pad regions MUST stay zero (the kernel relies on it).
    The returned reference params use the same effective precision
    (f32 layer 0, bf16-rounded weights cast back to f32 for layers 1..5)."""
    dims = [(IN_DIM, HIDDEN)] + [(HIDDEN, HIDDEN)] * 4 + [(HIDDEN, OUT_DIM)]
    w0_f32 = jnp.zeros((PAD, W0_COLS), jnp.float32)
    w_hidden = jnp.zeros((NUM_LAYERS - 1, PAD, PAD), jnp.bfloat16)
    b_packed = jnp.zeros((NUM_LAYERS, PAD, 1), jnp.float32)
    params_ref = []
    for l, (fan_in, fan_out) in enumerate(dims):
        key, sub = jax.random.split(key)
        std = (2.0 / (fan_in + fan_out)) ** 0.5
        w = jax.random.normal(sub, (fan_out, fan_in), jnp.float32) * std  # (out, in)
        b = jnp.zeros((fan_out,), jnp.float32)
        if l == 0:
            w0_f32 = w0_f32.at[:fan_out, :fan_in].set(w)
            w_eff = w                                   # layer 0 stays f32 in-kernel
        else:
            w_bf16 = w.astype(jnp.bfloat16)
            w_hidden = w_hidden.at[l - 1, :fan_out, :fan_in].set(w_bf16)
            w_eff = w_bf16.astype(jnp.float32)
        b_packed = b_packed.at[l, :fan_out, 0].set(b)
        params_ref.append((w_eff, b))
    return w0_f32, w_hidden, b_packed, params_ref


def reference_forward(x, params_ref):
    h = x
    for l, (w, b) in enumerate(params_ref):   # w is (out, in) like PyTorch
        h = h @ w.T + b
        if l < len(params_ref) - 1:
            h = jnp.maximum(h, 0.0)
    return h


if __name__ == "__main__":
    key = jax.random.PRNGKey(0)
    key, kparams, kx = jax.random.split(key, 3)

    w0_f32, w_hidden, b_packed, params_ref = init_params(kparams)

    # Two small batches: N=96 exercises the single-tile path, N=300 exercises
    # the balanced even (2-tile) grid used for v7x megacore.
    for n in (96, 300):
        x = jax.random.normal(jax.random.fold_in(kx, n), (n, IN_DIM), jnp.float32)
        out = jax.block_until_ready(
            my_method_forward(x, w0_f32, w_hidden, b_packed, tb=2048))
        ref = reference_forward(x, params_ref)
        assert out.shape == (n, OUT_DIM)
        # bf16 activations in the matmul path -> loosened tolerance vs f32 reference.
        assert jnp.allclose(out, ref, atol=2e-2, rtol=2e-2), f"mismatch at N={n}"

    print("KERNEL_OK")
</pallas_src>

<mosaic_0001>
module attributes {stable_mosaic.version = 11 : i64} {
  func.func @mlp_kernel(%arg0: i32, %arg1: memref<2x128xf32, #tpu.memory_space<vmem>>, %arg2: memref<128x8xf32, #tpu.memory_space<vmem>>, %arg3: memref<5x128x128xbf16, #tpu.memory_space<vmem>>, %arg4: memref<6x128x1xf32, #tpu.memory_space<vmem>>, %arg5: memref<2x128xf32, #tpu.memory_space<vmem>>) attributes {dimension_semantics = [#tpu.dimension_semantics<parallel>], iteration_bounds = array<i64: 1>, scalar_prefetch = 0 : i64, scratch_operands = 0 : i64, tpu.core_type = #tpu.core_type<tc>, window_params = [{transform_indices = @transform_0, window_bounds = array<i64: 2, 128>}, {pipeline_mode = #tpu.pipeline_mode<synchronous>, transform_indices = @transform_1, window_bounds = array<i64: 128, 8>}, {pipeline_mode = #tpu.pipeline_mode<synchronous>, transform_indices = @transform_2, window_bounds = array<i64: 5, 128, 128>}, {pipeline_mode = #tpu.pipeline_mode<synchronous>, transform_indices = @transform_3, window_bounds = array<i64: 6, 128, 1>}, {transform_indices = @transform_4, window_bounds = array<i64: 2, 128>}]} {
    %c0 = arith.constant 0 : index
    %c0_0 = arith.constant 0 : index
    %0 = vector.load %arg1[%c0, %c0_0] : memref<2x128xf32, #tpu.memory_space<vmem>>, vector<2x128xf32>
    %c0_1 = arith.constant 0 : index
    %c0_2 = arith.constant 0 : index
    %1 = vector.load %arg2[%c0_1, %c0_2] : memref<128x8xf32, #tpu.memory_space<vmem>>, vector<128x8xf32>
    %2 = vector.extract_strided_slice %1 {offsets = [0, 0], sizes = [128, 1], strides = [1, 1]} : vector<128x8xf32> to vector<128x1xf32>
    %3 = vector.extract_strided_slice %0 {offsets = [0, 0], sizes = [1, 128], strides = [1, 1]} : vector<2x128xf32> to vector<1x128xf32>
    %4 = vector.broadcast %2 : vector<128x1xf32> to vector<128x128xf32>
    %5 = vector.broadcast %3 : vector<1x128xf32> to vector<128x128xf32>
    %6 = arith.mulf %4, %5 : vector<128x128xf32>
    %7 = vector.extract_strided_slice %1 {offsets = [0, 1], sizes = [128, 1], strides = [1, 1]} : vector<128x8xf32> to vector<128x1xf32>
    %8 = vector.extract_strided_slice %0 {offsets = [1, 0], sizes = [1, 128], strides = [1, 1]} : vector<2x128xf32> to vector<1x128xf32>
    %9 = vector.broadcast %7 : vector<128x1xf32> to vector<128x128xf32>
    %10 = vector.broadcast %8 : vector<1x128xf32> to vector<128x128xf32>
    %11 = arith.mulf %9, %10 : vector<128x128xf32>
    %12 = arith.addf %6, %11 : vector<128x128xf32>
    %c0_3 = arith.constant 0 : index
    %c0_4 = arith.constant 0 : index
    %c0_5 = arith.constant 0 : index
    %13 = vector.load %arg4[%c0_3, %c0_4, %c0_5] : memref<6x128x1xf32, #tpu.memory_space<vmem>>, vector<1x128x1xf32>
    %14 = vector.shape_cast %13 : vector<1x128x1xf32> to vector<128x1xf32>
    %15 = vector.broadcast %14 : vector<128x1xf32> to vector<128x128xf32>
    %16 = arith.addf %12, %15 : vector<128x128xf32>
    %cst = arith.constant 0.000000e+00 : f32
    %17 = vector.broadcast %cst : f32 to vector<128x128xf32>
    %18 = arith.maximumf %16, %17 : vector<128x128xf32>
    %c0_6 = arith.constant 0 : index
    %c0_7 = arith.constant 0 : index
    %c0_8 = arith.constant 0 : index
    %19 = vector.load %arg3[%c0_6, %c0_7, %c0_8] : memref<5x128x128xbf16, #tpu.memory_space<vmem>>, vector<1x128x128xbf16>
    %20 = vector.shape_cast %19 : vector<1x128x128xbf16> to vector<128x128xbf16>
    %21 = arith.truncf %18 : vector<128x128xf32> to vector<128x128xbf16>
    %cst_9 = arith.constant dense<0.000000e+00> : vector<128x128xf32>
    %22 = tpu.matmul %20, %21, %cst_9 {dimension_numbers = #tpu.dot_dimension_numbers<[1], [0], [0], [1], [0, 0, 1, 1], [], []>} : vector<128x128xbf16>, vector<128x128xbf16>, vector<128x128xf32> -> vector<128x128xf32>
    %c1 = arith.constant 1 : index
    %c0_10 = arith.constant 0 : index
    %c0_11 = arith.constant 0 : index
    %23 = vector.load %arg4[%c1, %c0_10, %c0_11] : memref<6x128x1xf32, #tpu.memory_space<vmem>>, vector<1x128x1xf32>
    %24 = vector.shape_cast %23 : vector<1x128x1xf32> to vector<128x1xf32>
    %25 = vector.broadcast %24 : vector<128x1xf32> to vector<128x128xf32>
    %26 = arith.addf %22, %25 : vector<128x128xf32>
    %cst_12 = arith.constant 0.000000e+00 : f32
    %27 = vector.broadcast %cst_12 : f32 to vector<128x128xf32>
    %28 = arith.maximumf %26, %27 : vector<128x128xf32>
    %c1_13 = arith.constant 1 : index
    %c0_14 = arith.constant 0 : index
    %c0_15 = arith.constant 0 : index
    %29 = vector.load %arg3[%c1_13, %c0_14, %c0_15] : memref<5x128x128xbf16, #tpu.memory_space<vmem>>, vector<1x128x128xbf16>
    %30 = vector.shape_cast %29 : vector<1x128x128xbf16> to vector<128x128xbf16>
    %31 = arith.truncf %28 : vector<128x128xf32> to vector<128x128xbf16>
    %cst_16 = arith.constant dense<0.000000e+00> : vector<128x128xf32>
    %32 = tpu.matmul %30, %31, %cst_16 {dimension_numbers = #tpu.dot_dimension_numbers<[1], [0], [0], [1], [0, 0, 1, 1], [], []>} : vector<128x128xbf16>, vector<128x128xbf16>, vector<128x128xf32> -> vector<128x128xf32>
    %c2 = arith.constant 2 : index
    %c0_17 = arith.constant 0 : index
    %c0_18 = arith.constant 0 : index
    %33 = vector.load %arg4[%c2, %c0_17, %c0_18] : memref<6x128x1xf32, #tpu.memory_space<vmem>>, vector<1x128x1xf32>
    %34 = vector.shape_cast %33 : vector<1x128x1xf32> to vector<128x1xf32>
    %35 = vector.broadcast %34 : vector<128x1xf32> to vector<128x128xf32>
    %36 = arith.addf %32, %35 : vector<128x128xf32>
    %cst_19 = arith.constant 0.000000e+00 : f32
    %37 = vector.broadcast %cst_19 : f32 to vector<128x128xf32>
    %38 = arith.maximumf %36, %37 : vector<128x128xf32>
    %c2_20 = arith.constant 2 : index
    %c0_21 = arith.constant 0 : index
    %c0_22 = arith.constant 0 : index
    %39 = vector.load %arg3[%c2_20, %c0_21, %c0_22] : memref<5x128x128xbf16, #tpu.memory_space<vmem>>, vector<1x128x128xbf16>
    %40 = vector.shape_cast %39 : vector<1x128x128xbf16> to vector<128x128xbf16>
    %41 = arith.truncf %38 : vector<128x128xf32> to vector<128x128xbf16>
    %cst_23 = arith.constant dense<0.000000e+00> : vector<128x128xf32>
    %42 = tpu.matmul %40, %41, %cst_23 {dimension_numbers = #tpu.dot_dimension_numbers<[1], [0], [0], [1], [0, 0, 1, 1], [], []>} : vector<128x128xbf16>, vector<128x128xbf16>, vector<128x128xf32> -> vector<128x128xf32>
    %c3 = arith.constant 3 : index
    %c0_24 = arith.constant 0 : index
    %c0_25 = arith.constant 0 : index
    %43 = vector.load %arg4[%c3, %c0_24, %c0_25] : memref<6x128x1xf32, #tpu.memory_space<vmem>>, vector<1x128x1xf32>
    %44 = vector.shape_cast %43 : vector<1x128x1xf32> to vector<128x1xf32>
    %45 = vector.broadcast %44 : vector<128x1xf32> to vector<128x128xf32>
    %46 = arith.addf %42, %45 : vector<128x128xf32>
    %cst_26 = arith.constant 0.000000e+00 : f32
    %47 = vector.broadcast %cst_26 : f32 to vector<128x128xf32>
    %48 = arith.maximumf %46, %47 : vector<128x128xf32>
    %c3_27 = arith.constant 3 : index
    %c0_28 = arith.constant 0 : index
    %c0_29 = arith.constant 0 : index
    %49 = vector.load %arg3[%c3_27, %c0_28, %c0_29] : memref<5x128x128xbf16, #tpu.memory_space<vmem>>, vector<1x128x128xbf16>
    %50 = vector.shape_cast %49 : vector<1x128x128xbf16> to vector<128x128xbf16>
    %51 = arith.truncf %48 : vector<128x128xf32> to vector<128x128xbf16>
    %cst_30 = arith.constant dense<0.000000e+00> : vector<128x128xf32>
    %52 = tpu.matmul %50, %51, %cst_30 {dimension_numbers = #tpu.dot_dimension_numbers<[1], [0], [0], [1], [0, 0, 1, 1], [], []>} : vector<128x128xbf16>, vector<128x128xbf16>, vector<128x128xf32> -> vector<128x128xf32>
    %c4 = arith.constant 4 : index
    %c0_31 = arith.constant 0 : index
    %c0_32 = arith.constant 0 : index
    %53 = vector.load %arg4[%c4, %c0_31, %c0_32] : memref<6x128x1xf32, #tpu.memory_space<vmem>>, vector<1x128x1xf32>
    %54 = vector.shape_cast %53 : vector<1x128x1xf32> to vector<128x1xf32>
    %55 = vector.broadcast %54 : vector<128x1xf32> to vector<128x128xf32>
    %56 = arith.addf %52, %55 : vector<128x128xf32>
    %cst_33 = arith.constant 0.000000e+00 : f32
    %57 = vector.broadcast %cst_33 : f32 to vector<128x128xf32>
    %58 = arith.maximumf %56, %57 : vector<128x128xf32>
    %c4_34 = arith.constant 4 : index
    %c0_35 = arith.constant 0 : index
    %c0_36 = arith.constant 0 : index
    %59 = vector.load %arg3[%c4_34, %c0_35, %c0_36] : memref<5x128x128xbf16, #tpu.memory_space<vmem>>, vector<1x16x128xbf16>
    %60 = vector.shape_cast %59 : vector<1x16x128xbf16> to vector<16x128xbf16>
    %61 = arith.truncf %58 : vector<128x128xf32> to vector<128x128xbf16>
    %cst_37 = arith.constant dense<0.000000e+00> : vector<16x128xf32>
    %62 = tpu.matmul %60, %61, %cst_37 {dimension_numbers = #tpu.dot_dimension_numbers<[1], [0], [0], [1], [0, 0, 1, 1], [], []>} : vector<16x128xbf16>, vector<128x128xbf16>, vector<16x128xf32> -> vector<16x128xf32>
    %c5 = arith.constant 5 : index
    %c0_38 = arith.constant 0 : index
    %c0_39 = arith.constant 0 : index
    %63 = vector.load %arg4[%c5, %c0_38, %c0_39] : memref<6x128x1xf32, #tpu.memory_space<vmem>>, vector<1x16x1xf32>
    %64 = vector.shape_cast %63 : vector<1x16x1xf32> to vector<16x1xf32>
    %65 = vector.broadcast %64 : vector<16x1xf32> to vector<16x128xf32>
    %66 = arith.addf %62, %65 : vector<16x128xf32>
    %67 = vector.extract_strided_slice %66 {offsets = [0, 0], sizes = [2, 128], strides = [1, 1]} : vector<16x128xf32> to vector<2x128xf32>
    %c0_40 = arith.constant 0 : index
    %c0_41 = arith.constant 0 : index
    %68 = vector.load %arg5[%c0_40, %c0_41] : memref<2x128xf32, #tpu.memory_space<vmem>>, vector<2x128xf32>
    tpu.vector_store %arg5[%c0_40, %c0_41], %67 {strides = array<i32>} : memref<2x128xf32, #tpu.memory_space<vmem>>, vector<2x128xf32>,
    return
  }
  func.func @transform_0(%arg0: i32) -> (i32, i32) {
    %c0_i32 = arith.constant 0 : i32
    %c0_i32_0 = arith.constant 0 : i32
    return %c0_i32, %arg0 : i32, i32
  }
  func.func @transform_1(%arg0: i32) -> (i32, i32) {
    %c0_i32 = arith.constant 0 : i32
    %c0_i32_0 = arith.constant 0 : i32
    %c0_i32_1 = arith.constant 0 : i32
    return %c0_i32, %c0_i32_0 : i32, i32
  }
  func.func @transform_2(%arg0: i32) -> (i32, i32, i32) {
    %c0_i32 = arith.constant 0 : i32
    %c0_i32_0 = arith.constant 0 : i32
    %c0_i32_1 = arith.constant 0 : i32
    %c0_i32_2 = arith.constant 0 : i32
    return %c0_i32, %c0_i32_0, %c0_i32_1 : i32, i32, i32
  }
  func.func @transform_3(%arg0: i32) -> (i32, i32, i32) {
    %c0_i32 = arith.constant 0 : i32
    %c0_i32_0 = arith.constant 0 : i32
    %c0_i32_1 = arith.constant 0 : i32
    %c0_i32_2 = arith.constant 0 : i32
    return %c0_i32, %c0_i32_0, %c0_i32_1 : i32, i32, i32
  }
  func.func @transform_4(%arg0: i32) -> (i32, i32) {
    %c0_i32 = arith.constant 0 : i32
    %c0_i32_0 = arith.constant 0 : i32
    return %c0_i32, %arg0 : i32, i32
  }
}

</mosaic_0001>

<llo_original>
// kernel: tpu_custom_call.1
$region0: #{tpu_custom_call.1}
  #allocation0 [shape = 'u32[]', space=smem, size = 0x4, offset = 0x4, fixed_abs, tag = 'smem constant byte address 0x4 - core index']
  #allocation1 [shape = 'u32[72,128]{1,0:T(1,128)}', space=vmem, size = 0x9000, scoped, tag = 'internal scratch']
  %s0 = inlined_call_operand.vmem [shape: f32[2,128], index: 0, kind: input, shape index: {}]
  %s1 = inlined_call_operand.vmem [shape: f32[128,8], index: 1, kind: input, shape index: {}]
  %s2 = inlined_call_operand.vmem [shape: bf16[5,128,128], index: 2, kind: input, shape index: {}]
  %s3 = inlined_call_operand.vmem [shape: f32[6,128,1], index: 3, kind: input, shape index: {}]
  %s4 = inlined_call_operand.hbm [shape: f32[2,128], index: 4, kind: output, shape index: {}]
  %s5 = sld [smem:[#allocation0]]
  $region26: #{tpu_custom_call.1} parent=0
    _
  %s7 = ssub.s32 1, %s5
  %s8 = scalar_select 0, %s7, %s5
  $region1: #{tpu_custom_call.1} parent=0
    #allocation2 [shape = 'u8[1024]{0}', space=vmem, size = 0x400, scoped, tag = 'output window, operand 0, single buffered']
    #allocation3 [shape = 's32[1]{0}', space=sflag, size = 0x4, scoped, tag = 'scoped memory for tpu_custom_call.1']
    %9 = vsyncpa [#allocation3], 0
    // Predicated region
    $region2: #{tpu_custom_call.1} parent=1 // pred_check
      _
    $region3: #{tpu_custom_call.1} parent=1 // pred_check_branch
      %11 = sbr.rel (0) target = $region5
    $region4: #{tpu_custom_call.1} parent=1 // pred_region
      _
    $region5: #{tpu_custom_call.1} parent=1 // pred_fallthru
      _
    // Predicated region
    $region6: #{tpu_custom_call.1} parent=1 // pred_check
      _
    $region7: #{tpu_custom_call.1} parent=1 // pred_check_branch
      %13 = sbr.rel (0) target = $region9
    $region8: #{tpu_custom_call.1} parent=1 // pred_region
      _
    $region9: #{tpu_custom_call.1} parent=1 // pred_fallthru
      _
    // Predicated region
    $region10: #{tpu_custom_call.1} parent=1 // pred_check
      _
    $region11: #{tpu_custom_call.1} parent=1 // pred_check_branch
      %15 = sbr.rel (0) target = $region13
    $region12: #{tpu_custom_call.1} parent=1 // pred_region
      _
    $region13: #{tpu_custom_call.1} parent=1 // pred_fallthru
      _
    // Predicated region
    $region14: #{tpu_custom_call.1} parent=1 // pred_check
      _
    $region15: #{tpu_custom_call.1} parent=1 // pred_check_branch
      %17 = sbr.rel (0) target = $region17
    $region16: #{tpu_custom_call.1} parent=1 // pred_region
      _
    $region17: #{tpu_custom_call.1} parent=1 // pred_fallthru
      _
    %v18 = vld [vmem:[%s0] sm:$0x3]
    %v19 = vld [vmem:[%s1] sm:$0xff]
    %v20 = vld [vmem:[%s1 + $0x8] sm:$0xff]
    %v21 = vld [vmem:[%s1 + $0x10] sm:$0xff]
    %v22 = vld [vmem:[%s1 + $0x18] sm:$0xff]
    %v23 = vld [vmem:[%s1 + $0x20] sm:$0xff]
    %v24 = vld [vmem:[%s1 + $0x28] sm:$0xff]
    %v25 = vld [vmem:[%s1 + $0x30] sm:$0xff]
    %v26 = vld [vmem:[%s1 + $0x38] sm:$0xff]
    %v27 = vld [vmem:[%s1 + $0x40] sm:$0xff]
    %v28 = vld [vmem:[%s1 + $0x48] sm:$0xff]
    %v29 = vld [vmem:[%s1 + $0x50] sm:$0xff]
    %v30 = vld [vmem:[%s1 + $0x58] sm:$0xff]
    %v31 = vld [vmem:[%s1 + $0x60] sm:$0xff]
    %v32 = vld [vmem:[%s1 + $0x68] sm:$0xff]
    %v33 = vld [vmem:[%s1 + $0x70] sm:$0xff]
    %v34 = vld [vmem:[%s1 + $0x78] sm:$0xff]
    %36 = vset.pattern.permute.xlu0 0
    %37 = vperm.xlu0 %36, %v19
    %v38 = vpop.permute.xlu0 %37
    %41 = vset.pattern.permute.xlu0 0
    %42 = vperm.xlu0 %41, %v20
    %v43 = vpop.permute.xlu0 %42
    %46 = vset.pattern.permute.xlu0 0
    %47 = vperm.xlu0 %46, %v21
    %v48 = vpop.permute.xlu0 %47
    %51 = vset.pattern.permute.xlu0 0
    %52 = vperm.xlu0 %51, %v22
    %v53 = vpop.permute.xlu0 %52
    %56 = vset.pattern.permute.xlu0 0
    %57 = vperm.xlu0 %56, %v23
    %v58 = vpop.permute.xlu0 %57
    %61 = vset.pattern.permute.xlu0 0
    %62 = vperm.xlu0 %61, %v24
    %v63 = vpop.permute.xlu0 %62
    %66 = vset.pattern.permute.xlu0 0
    %67 = vperm.xlu0 %66, %v25
    %v68 = vpop.permute.xlu0 %67
    %71 = vset.pattern.permute.xlu0 0
    %72 = vperm.xlu0 %71, %v26
    %v73 = vpop.permute.xlu0 %72
    %76 = vset.pattern.permute.xlu0 0
    %77 = vperm.xlu0 %76, %v27
    %v78 = vpop.permute.xlu0 %77
    %81 = vset.pattern.permute.xlu0 0
    %82 = vperm.xlu0 %81, %v28
    %v83 = vpop.permute.xlu0 %82
    %86 = vset.pattern.permute.xlu0 0
    %87 = vperm.xlu0 %86, %v29
    %v88 = vpop.permute.xlu0 %87
    %91 = vset.pattern.permute.xlu0 0
    %92 = vperm.xlu0 %91, %v30
    %v93 = vpop.permute.xlu0 %92
    %96 = vset.pattern.permute.xlu0 0
    %97 = vperm.xlu0 %96, %v31
    %v98 = vpop.permute.xlu0 %97
    %101 = vset.pattern.permute.xlu0 0
    %102 = vperm.xlu0 %101, %v32
    %v103 = vpop.permute.xlu0 %102
    %106 = vset.pattern.permute.xlu0 0
    %107 = vperm.xlu0 %106, %v33
    %v108 = vpop.permute.xlu0 %107
    %111 = vset.pattern.permute.xlu0 0
    %112 = vperm.xlu0 %111, %v34
    %v113 = vpop.permute.xlu0 %112
    %v115 = vperm.slane %v18, 0
    %v116 = vmul.f32 %v38, %v115
    %v117 = vmul.f32 %v43, %v115
    %v118 = vmul.f32 %v48, %v115
    %v119 = vmul.f32 %v53, %v115
    %v120 = vmul.f32 %v58, %v115
    %v121 = vmul.f32 %v63, %v115
    %v122 = vmul.f32 %v68, %v115
    %v123 = vmul.f32 %v73, %v115
    %v124 = vmul.f32 %v78, %v115
    %v125 = vmul.f32 %v83, %v115
    %v126 = vmul.f32 %v88, %v115
    %v127 = vmul.f32 %v93, %v115
    %v128 = vmul.f32 %v98, %v115
    %v129 = vmul.f32 %v103, %v115
    %v130 = vmul.f32 %v108, %v115
    %v131 = vmul.f32 %v113, %v115
    %132 = vset.pattern.permute.xlu0 1
    %133 = vperm.xlu0 %132, %v19
    %v134 = vpop.permute.xlu0 %133
    %136 = vset.pattern.permute.xlu0 1
    %137 = vperm.xlu0 %136, %v20
    %v138 = vpop.permute.xlu0 %137
    %140 = vset.pattern.permute.xlu0 1
    %141 = vperm.xlu0 %140, %v21
    %v142 = vpop.permute.xlu0 %141
    %144 = vset.pattern.permute.xlu0 1
    %145 = vperm.xlu0 %144, %v22
    %v146 = vpop.permute.xlu0 %145
    %148 = vset.pattern.permute.xlu0 1
    %149 = vperm.xlu0 %148, %v23
    %v150 = vpop.permute.xlu0 %149
    %152 = vset.pattern.permute.xlu0 1
    %153 = vperm.xlu0 %152, %v24
    %v154 = vpop.permute.xlu0 %153
    %156 = vset.pattern.permute.xlu0 1
    %157 = vperm.xlu0 %156, %v25
    %v158 = vpop.permute.xlu0 %157
    %160 = vset.pattern.permute.xlu0 1
    %161 = vperm.xlu0 %160, %v26
    %v162 = vpop.permute.xlu0 %161
    %164 = vset.pattern.permute.xlu0 1
    %165 = vperm.xlu0 %164, %v27
    %v166 = vpop.permute.xlu0 %165
    %168 = vset.pattern.permute.xlu0 1
    %169 = vperm.xlu0 %168, %v28
    %v170 = vpop.permute.xlu0 %169
    %172 = vset.pattern.permute.xlu0 1
    %173 = vperm.xlu0 %172, %v29
    %v174 = vpop.permute.xlu0 %173
    %176 = vset.pattern.permute.xlu0 1
    %177 = vperm.xlu0 %176, %v30
    %v178 = vpop.permute.xlu0 %177
    %180 = vset.pattern.permute.xlu0 1
    %181 = vperm.xlu0 %180, %v31
    %v182 = vpop.permute.xlu0 %181
    %184 = vset.pattern.permute.xlu0 1
    %185 = vperm.xlu0 %184, %v32
    %v186 = vpop.permute.xlu0 %185
    %188 = vset.pattern.permute.xlu0 1
    %189 = vperm.xlu0 %188, %v33
    %v190 = vpop.permute.xlu0 %189
    %192 = vset.pattern.permute.xlu0 1
    %193 = vperm.xlu0 %192, %v34
    %v194 = vpop.permute.xlu0 %193
    %v196 = vperm.slane %v18, 1
    %v197 = vmul.f32 %v134, %v196
    %v198 = vmul.f32 %v138, %v196
    %v199 = vmul.f32 %v142, %v196
    %v200 = vmul.f32 %v146, %v196
    %v201 = vmul.f32 %v150, %v196
    %v202 = vmul.f32 %v154, %v196
    %v203 = vmul.f32 %v158, %v196
    %v204 = vmul.f32 %v162, %v196
    %v205 = vmul.f32 %v166, %v196
    %v206 = vmul.f32 %v170, %v196
    %v207 = vmul.f32 %v174, %v196
    %v208 = vmul.f32 %v178, %v196
    %v209 = vmul.f32 %v182, %v196
    %v210 = vmul.f32 %v186, %v196
    %v211 = vmul.f32 %v190, %v196
    %v212 = vmul.f32 %v194, %v196
    %v213 = vadd.f32 %v116, %v197
    %v214 = vadd.f32 %v117, %v198
    %v215 = vadd.f32 %v118, %v199
    %v216 = vadd.f32 %v119, %v200
    %v217 = vadd.f32 %v120, %v201
    %v218 = vadd.f32 %v121, %v202
    %v219 = vadd.f32 %v122, %v203
    %v220 = vadd.f32 %v123, %v204
    %v221 = vadd.f32 %v124, %v205
    %v222 = vadd.f32 %v125, %v206
    %v223 = vadd.f32 %v126, %v207
    %v224 = vadd.f32 %v127, %v208
    %v225 = vadd.f32 %v128, %v209
    %v226 = vadd.f32 %v129, %v210
    %v227 = vadd.f32 %v130, %v211
    %v228 = vadd.f32 %v131, %v212
    %v229 = vld [vmem:[%s3] sm:$0xff]
    %v230 = vld [vmem:[%s3 + $0x8] sm:$0xff]
    %v231 = vld [vmem:[%s3 + $0x10] sm:$0xff]
    %v232 = vld [vmem:[%s3 + $0x18] sm:$0xff]
    %v233 = vld [vmem:[%s3 + $0x20] sm:$0xff]
    %v234 = vld [vmem:[%s3 + $0x28] sm:$0xff]
    %v235 = vld [vmem:[%s3 + $0x30] sm:$0xff]
    %v236 = vld [vmem:[%s3 + $0x38] sm:$0xff]
    %v237 = vld [vmem:[%s3 + $0x40] sm:$0xff]
    %v238 = vld [vmem:[%s3 + $0x48] sm:$0xff]
    %v239 = vld [vmem:[%s3 + $0x50] sm:$0xff]
    %v240 = vld [vmem:[%s3 + $0x58] sm:$0xff]
    %v241 = vld [vmem:[%s3 + $0x60] sm:$0xff]
    %v242 = vld [vmem:[%s3 + $0x68] sm:$0xff]
    %v243 = vld [vmem:[%s3 + $0x70] sm:$0xff]
    %v244 = vld [vmem:[%s3 + $0x78] sm:$0xff]
    %246 = vset.pattern.permute.xlu0 0
    %247 = vperm.xlu0 %246, %v229
    %v248 = vpop.permute.xlu0 %247
    %251 = vset.pattern.permute.xlu0 0
    %252 = vperm.xlu0 %251, %v230
    %v253 = vpop.permute.xlu0 %252
    %256 = vset.pattern.permute.xlu0 0
    %257 = vperm.xlu0 %256, %v231
    %v258 = vpop.permute.xlu0 %257
    %261 = vset.pattern.permute.xlu0 0
    %262 = vperm.xlu0 %261, %v232
    %v263 = vpop.permute.xlu0 %262
    %266 = vset.pattern.permute.xlu0 0
    %267 = vperm.xlu0 %266, %v233
    %v268 = vpop.permute.xlu0 %267
    %271 = vset.pattern.permute.xlu0 0
    %272 = vperm.xlu0 %271, %v234
    %v273 = vpop.permute.xlu0 %272
    %276 = vset.pattern.permute.xlu0 0
    %277 = vperm.xlu0 %276, %v235
    %v278 = vpop.permute.xlu0 %277
    %281 = vset.pattern.permute.xlu0 0
    %282 = vperm.xlu0 %281, %v236
    %v283 = vpop.permute.xlu0 %282
    %286 = vset.pattern.permute.xlu0 0
    %287 = vperm.xlu0 %286, %v237
    %v288 = vpop.permute.xlu0 %287
    %291 = vset.pattern.permute.xlu0 0
    %292 = vperm.xlu0 %291, %v238
    %v293 = vpop.permute.xlu0 %292
    %296 = vset.pattern.permute.xlu0 0
    %297 = vperm.xlu0 %296, %v239
    %v298 = vpop.permute.xlu0 %297
    %301 = vset.pattern.permute.xlu0 0
    %302 = vperm.xlu0 %301, %v240
    %v303 = vpop.permute.xlu0 %302
    %306 = vset.pattern.permute.xlu0 0
    %307 = vperm.xlu0 %306, %v241
    %v308 = vpop.permute.xlu0 %307
    %311 = vset.pattern.permute.xlu0 0
    %312 = vperm.xlu0 %311, %v242
    %v313 = vpop.permute.xlu0 %312
    %316 = vset.pattern.permute.xlu0 0
    %317 = vperm.xlu0 %316, %v243
    %v318 = vpop.permute.xlu0 %317
    %321 = vset.pattern.permute.xlu0 0
    %322 = vperm.xlu0 %321, %v244
    %v323 = vpop.permute.xlu0 %322
    %v325 = vadd.f32 %v213, %v248
    %v326 = vadd.f32 %v214, %v253
    %v327 = vadd.f32 %v215, %v258
    %v328 = vadd.f32 %v216, %v263
    %v329 = vadd.f32 %v217, %v268
    %v330 = vadd.f32 %v218, %v273
    %v331 = vadd.f32 %v219, %v278
    %v332 = vadd.f32 %v220, %v283
    %v333 = vadd.f32 %v221, %v288
    %v334 = vadd.f32 %v222, %v293
    %v335 = vadd.f32 %v223, %v298
    %v336 = vadd.f32 %v224, %v303
    %v337 = vadd.f32 %v225, %v308
    %v338 = vadd.f32 %v226, %v313
    %v339 = vadd.f32 %v227, %v318
    %v340 = vadd.f32 %v228, %v323
    %v341 = vmax.f32 %v325, 0.0
    %v342 = vmax.f32 %v326, 0.0
    %v343 = vmax.f32 %v327, 0.0
    %v344 = vmax.f32 %v328, 0.0
    %v345 = vmax.f32 %v329, 0.0
    %v346 = vmax.f32 %v330, 0.0
    %v347 = vmax.f32 %v331, 0.0
    %v348 = vmax.f32 %v332, 0.0
    %v349 = vmax.f32 %v333, 0.0
    %v350 = vmax.f32 %v334, 0.0
    %v351 = vmax.f32 %v335, 0.0
    %v352 = vmax.f32 %v336, 0.0
    %v353 = vmax.f32 %v337, 0.0
    %v354 = vmax.f32 %v338, 0.0
    %v355 = vmax.f32 %v339, 0.0
    %v356 = vmax.f32 %v340, 0.0
    %v357 = vld [vmem:[%s2] sm:$0xf]
    %v358 = vld [vmem:[%s2 + $0x4] sm:$0xf]
    %v359 = vld [vmem:[%s2 + $0x8] sm:$0xf]
    %v360 = vld [vmem:[%s2 + $0xc] sm:$0xf]
    %v361 = vld [vmem:[%s2 + $0x10] sm:$0xf]
    %v362 = vld [vmem:[%s2 + $0x14] sm:$0xf]
    %v363 = vld [vmem:[%s2 + $0x18] sm:$0xf]
    %v364 = vld [vmem:[%s2 + $0x1c] sm:$0xf]
    %v365 = vld [vmem:[%s2 + $0x20] sm:$0xf]
    %v366 = vld [vmem:[%s2 + $0x24] sm:$0xf]
    %v367 = vld [vmem:[%s2 + $0x28] sm:$0xf]
    %v368 = vld [vmem:[%s2 + $0x2c] sm:$0xf]
    %v369 = vld [vmem:[%s2 + $0x30] sm:$0xf]
    %v370 = vld [vmem:[%s2 + $0x34] sm:$0xf]
    %v371 = vld [vmem:[%s2 + $0x38] sm:$0xf]
    %v372 = vld [vmem:[%s2 + $0x3c] sm:$0xf]
    %v373 = vpack.c.bf16 %v342, %v341
    %v374 = vpack.c.bf16 %v344, %v343
    %v375 = vpack.c.bf16 %v346, %v345
    %v376 = vpack.c.bf16 %v348, %v347
    %v377 = vpack.c.bf16 %v350, %v349
    %v378 = vpack.c.bf16 %v352, %v351
    %v379 = vpack.c.bf16 %v354, %v353
    %v380 = vpack.c.bf16 %v356, %v355
    %s381 = scalar_lea.vmem %s3, 128
    %v382 = vld [vmem:[%s381] sm:$0xff]
    %v383 = vld [vmem:[%s381 + $0x8] sm:$0xff]
    %v384 = vld [vmem:[%s381 + $0x10] sm:$0xff]
    %v385 = vld [vmem:[%s381 + $0x18] sm:$0xff]
    %v386 = vld [vmem:[%s381 + $0x20] sm:$0xff]
    %v387 = vld [vmem:[%s381 + $0x28] sm:$0xff]
    %v388 = vld [vmem:[%s381 + $0x30] sm:$0xff]
    %v389 = vld [vmem:[%s381 + $0x38] sm:$0xff]
    %v390 = vld [vmem:[%s381 + $0x40] sm:$0xff]
    %v391 = vld [vmem:[%s381 + $0x48] sm:$0xff]
    %v392 = vld [vmem:[%s381 + $0x50] sm:$0xff]
    %v393 = vld [vmem:[%s381 + $0x58] sm:$0xff]
    %v394 = vld [vmem:[%s381 + $0x60] sm:$0xff]
    %v395 = vld [vmem:[%s381 + $0x68] sm:$0xff]
    %v396 = vld [vmem:[%s381 + $0x70] sm:$0xff]
    %v397 = vld [vmem:[%s381 + $0x78] sm:$0xff]
    %399 = vset.pattern.permute.xlu0 0
    %400 = vperm.xlu0 %399, %v382
    %v401 = vpop.permute.xlu0 %400
    %404 = vset.pattern.permute.xlu0 0
    %405 = vperm.xlu0 %404, %v383
    %v406 = vpop.permute.xlu0 %405
    %409 = vset.pattern.permute.xlu0 0
    %410 = vperm.xlu0 %409, %v384
    %v411 = vpop.permute.xlu0 %410
    %414 = vset.pattern.permute.xlu0 0
    %415 = vperm.xlu0 %414, %v385
    %v416 = vpop.permute.xlu0 %415
    %419 = vset.pattern.permute.xlu0 0
    %420 = vperm.xlu0 %419, %v386
    %v421 = vpop.permute.xlu0 %420
    %424 = vset.pattern.permute.xlu0 0
    %425 = vperm.xlu0 %424, %v387
    %v426 = vpop.permute.xlu0 %425
    %429 = vset.pattern.permute.xlu0 0
    %430 = vperm.xlu0 %429, %v388
    %v431 = vpop.permute.xlu0 %430
    %434 = vset.pattern.permute.xlu0 0
    %435 = vperm.xlu0 %434, %v389
    %v436 = vpop.permute.xlu0 %435
    %439 = vset.pattern.permute.xlu0 0
    %440 = vperm.xlu0 %439, %v390
    %v441 = vpop.permute.xlu0 %440
    %444 = vset.pattern.permute.xlu0 0
    %445 = vperm.xlu0 %444, %v391
    %v446 = vpop.permute.xlu0 %445
    %449 = vset.pattern.permute.xlu0 0
    %450 = vperm.xlu0 %449, %v392
    %v451 = vpop.permute.xlu0 %450
    %454 = vset.pattern.permute.xlu0 0
    %455 = vperm.xlu0 %454, %v393
    %v456 = vpop.permute.xlu0 %455
    %459 = vset.pattern.permute.xlu0 0
    %460 = vperm.xlu0 %459, %v394
    %v461 = vpop.permute.xlu0 %460
    %464 = vset.pattern.permute.xlu0 0
    %465 = vperm.xlu0 %464, %v395
    %v466 = vpop.permute.xlu0 %465
    %469 = vset.pattern.permute.xlu0 0
    %470 = vperm.xlu0 %469, %v396
    %v471 = vpop.permute.xlu0 %470
    %474 = vset.pattern.permute.xlu0 0
    %475 = vperm.xlu0 %474, %v397
    %v476 = vpop.permute.xlu0 %475
    %v494 = vunpack.c.l.b16 %v357
    %v495 = vunpack.c.l.b16 %v358
    %v496 = vunpack.c.l.b16 %v359
    %v497 = vunpack.c.l.b16 %v360
    %v498 = vunpack.c.l.b16 %v361
    %v499 = vunpack.c.l.b16 %v362
    %v500 = vunpack.c.l.b16 %v363
    %v501 = vunpack.c.l.b16 %v364
    %v502 = vunpack.c.l.b16 %v365
    %v503 = vunpack.c.l.b16 %v366
    %v504 = vunpack.c.l.b16 %v367
    %v505 = vunpack.c.l.b16 %v368
    %v506 = vunpack.c.l.b16 %v369
    %v507 = vunpack.c.l.b16 %v370
    %v508 = vunpack.c.l.b16 %v371
    %v509 = vunpack.c.l.b16 %v372
    %v510 = vpack.c.b16 %v495, %v494
    %v511 = vpack.c.b16 %v497, %v496
    %v512 = vpack.c.b16 %v499, %v498
    %v513 = vpack.c.b16 %v501, %v500
    %v514 = vpack.c.b16 %v503, %v502
    %v515 = vpack.c.b16 %v505, %v504
    %v516 = vpack.c.b16 %v507, %v506
    %v517 = vpack.c.b16 %v509, %v508
    %526 = vmatpush.bf16.msra.mxu0 %v380
    %527 = vmatpush.bf16.msra.mxu0 %v379
    %528 = vmatpush.bf16.msra.mxu0 %v378
    %529 = vmatpush.bf16.msra.mxu0 %v377
    %530 = vmatpush.bf16.msra.mxu0 %v376
    %531 = vmatpush.bf16.msra.mxu0 %v375
    %532 = vmatpush.bf16.msra.mxu0 %v374
    %533 = vmatpush.bf16.msra.mxu0 %v373
    %534 = vmatmul.bf16.gmra.mxu0 %v510
    %v535 = vpop.f32.mrf.mxu0
    %v536 = vadd.f32 %v401, %v535
    %v537 = vpop.f32.mrf.mxu0
    %v538 = vadd.f32 %v406, %v537
    %539 = vmatmul.bf16.gmra.mxu0 %v511
    %v540 = vpop.f32.mrf.mxu0
    %v541 = vadd.f32 %v411, %v540
    %v542 = vpop.f32.mrf.mxu0
    %v543 = vadd.f32 %v416, %v542
    %544 = vmatmul.bf16.gmra.mxu0 %v512
    %v545 = vpop.f32.mrf.mxu0
    %v546 = vadd.f32 %v421, %v545
    %v547 = vpop.f32.mrf.mxu0
    %v548 = vadd.f32 %v426, %v547
    %549 = vmatmul.bf16.gmra.mxu0 %v513
    %v550 = vpop.f32.mrf.mxu0
    %v551 = vadd.f32 %v431, %v550
    %v552 = vpop.f32.mrf.mxu0
    %v553 = vadd.f32 %v436, %v552
    %554 = vmatmul.bf16.gmra.mxu0 %v514
    %v555 = vpop.f32.mrf.mxu0
    %v556 = vadd.f32 %v441, %v555
    %v557 = vpop.f32.mrf.mxu0
    %v558 = vadd.f32 %v446, %v557
    %559 = vmatmul.bf16.gmra.mxu0 %v515
    %v560 = vpop.f32.mrf.mxu0
    %v561 = vadd.f32 %v451, %v560
    %v562 = vpop.f32.mrf.mxu0
    %v563 = vadd.f32 %v456, %v562
    %564 = vmatmul.bf16.gmra.mxu0 %v516
    %v565 = vpop.f32.mrf.mxu0
    %v566 = vadd.f32 %v461, %v565
    %v567 = vpop.f32.mrf.mxu0
    %v568 = vadd.f32 %v466, %v567
    %569 = vmatmul.bf16.gmra.mxu0 %v517
    %v570 = vpop.f32.mrf.mxu0
    %v571 = vadd.f32 %v471, %v570
    %v572 = vpop.f32.mrf.mxu0
    %v573 = vadd.f32 %v476, %v572
    %574 = vdwg.mxu0
    %v575 = vmax.f32 %v536, 0.0
    %v576 = vmax.f32 %v538, 0.0
    %v577 = vmax.f32 %v541, 0.0
    %v578 = vmax.f32 %v543, 0.0
    %v579 = vmax.f32 %v546, 0.0
    %v580 = vmax.f32 %v548, 0.0
    %v581 = vmax.f32 %v551, 0.0
    %v582 = vmax.f32 %v553, 0.0
    %v583 = vmax.f32 %v556, 0.0
    %v584 = vmax.f32 %v558, 0.0
    %v585 = vmax.f32 %v561, 0.0
    %v586 = vmax.f32 %v563, 0.0
    %v587 = vmax.f32 %v566, 0.0
    %v588 = vmax.f32 %v568, 0.0
    %v589 = vmax.f32 %v571, 0.0
    %v590 = vmax.f32 %v573, 0.0
    %s591 = scalar_lea.vmem %s2, 64
    %v592 = vld [vmem:[%s591] sm:$0xf]
    %v593 = vld [vmem:[%s591 + $0x4] sm:$0xf]
    %v594 = vld [vmem:[%s591 + $0x8] sm:$0xf]
    %v595 = vld [vmem:[%s591 + $0xc] sm:$0xf]
    %v596 = vld [vmem:[%s591 + $0x10] sm:$0xf]
    %v597 = vld [vmem:[%s591 + $0x14] sm:$0xf]
    %v598 = vld [vmem:[%s591 + $0x18] sm:$0xf]
    %v599 = vld [vmem:[%s591 + $0x1c] sm:$0xf]
    %v600 = vld [vmem:[%s591 + $0x20] sm:$0xf]
    %v601 = vld [vmem:[%s591 + $0x24] sm:$0xf]
    %v602 = vld [vmem:[%s591 + $0x28] sm:$0xf]
    %v603 = vld [vmem:[%s591 + $0x2c] sm:$0xf]
    %v604 = vld [vmem:[%s591 + $0x30] sm:$0xf]
    %v605 = vld [vmem:[%s591 + $0x34] sm:$0xf]
    %v606 = vld [vmem:[%s591 + $0x38] sm:$0xf]
    %v607 = vld [vmem:[%s591 + $0x3c] sm:$0xf]
    %v608 = vpack.c.bf16 %v576, %v575
    %v609 = vpack.c.bf16 %v578, %v577
    %v610 = vpack.c.bf16 %v580, %v579
    %v611 = vpack.c.bf16 %v582, %v581
    %v612 = vpack.c.bf16 %v584, %v583
    %v613 = vpack.c.bf16 %v586, %v585
    %v614 = vpack.c.bf16 %v588, %v587
    %v615 = vpack.c.bf16 %v590, %v589
    %s616 = scalar_lea.vmem %s3, 256
    %v617 = vld [vmem:[%s616] sm:$0xff]
    %v618 = vld [vmem:[%s616 + $0x8] sm:$0xff]
    %v619 = vld [vmem:[%s616 + $0x10] sm:$0xff]
    %v620 = vld [vmem:[%s616 + $0x18] sm:$0xff]
    %v621 = vld [vmem:[%s616 + $0x20] sm:$0xff]
    %v622 = vld [vmem:[%s616 + $0x28] sm:$0xff]
    %v623 = vld [vmem:[%s616 + $0x30] sm:$0xff]
    %v624 = vld [vmem:[%s616 + $0x38] sm:$0xff]
    %v625 = vld [vmem:[%s616 + $0x40] sm:$0xff]
    %v626 = vld [vmem:[%s616 + $0x48] sm:$0xff]
    %v627 = vld [vmem:[%s616 + $0x50] sm:$0xff]
    %v628 = vld [vmem:[%s616 + $0x58] sm:$0xff]
    %v629 = vld [vmem:[%s616 + $0x60] sm:$0xff]
    %v630 = vld [vmem:[%s616 + $0x68] sm:$0xff]
    %v631 = vld [vmem:[%s616 + $0x70] sm:$0xff]
    %v632 = vld [vmem:[%s616 + $0x78] sm:$0xff]
    %634 = vset.pattern.permute.xlu0 0
    %635 = vperm.xlu0 %634, %v617
    %v636 = vpop.permute.xlu0 %635
    %639 = vset.pattern.permute.xlu0 0
    %640 = vperm.xlu0 %639, %v618
    %v641 = vpop.permute.xlu0 %640
    %644 = vset.pattern.permute.xlu0 0
    %645 = vperm.xlu0 %644, %v619
    %v646 = vpop.permute.xlu0 %645
    %649 = vset.pattern.permute.xlu0 0
    %650 = vperm.xlu0 %649, %v620
    %v651 = vpop.permute.xlu0 %650
    %654 = vset.pattern.permute.xlu0 0
    %655 = vperm.xlu0 %654, %v621
    %v656 = vpop.permute.xlu0 %655
    %659 = vset.pattern.permute.xlu0 0
    %660 = vperm.xlu0 %659, %v622
    %v661 = vpop.permute.xlu0 %660
    %664 = vset.pattern.permute.xlu0 0
    %665 = vperm.xlu0 %664, %v623
    %v666 = vpop.permute.xlu0 %665
    %669 = vset.pattern.permute.xlu0 0
    %670 = vperm.xlu0 %669, %v624
    %v671 = vpop.permute.xlu0 %670
    %674 = vset.pattern.permute.xlu0 0
    %675 = vperm.xlu0 %674, %v625
    %v676 = vpop.permute.xlu0 %675
    %679 = vset.pattern.permute.xlu0 0
    %680 = vperm.xlu0 %679, %v626
    %v681 = vpop.permute.xlu0 %680
    %684 = vset.pattern.permute.xlu0 0
    %685 = vperm.xlu0 %684, %v627
    %v686 = vpop.permute.xlu0 %685
    %689 = vset.pattern.permute.xlu0 0
    %690 = vperm.xlu0 %689, %v628
    %v691 = vpop.permute.xlu0 %690
    %694 = vset.pattern.permute.xlu0 0
    %695 = vperm.xlu0 %694, %v629
    %v696 = vpop.permute.xlu0 %695
    %699 = vset.pattern.permute.xlu0 0
    %700 = vperm.xlu0 %699, %v630
    %v701 = vpop.permute.xlu0 %700
    %704 = vset.pattern.permute.xlu0 0
    %705 = vperm.xlu0 %704, %v631
    %v706 = vpop.permute.xlu0 %705
    %709 = vset.pattern.permute.xlu0 0
    %710 = vperm.xlu0 %709, %v632
    %v711 = vpop.permute.xlu0 %710
    %v729 = vunpack.c.l.b16 %v592
    %v730 = vunpack.c.l.b16 %v593
    %v731 = vunpack.c.l.b16 %v594
    %v732 = vunpack.c.l.b16 %v595
    %v733 = vunpack.c.l.b16 %v596
    %v734 = vunpack.c.l.b16 %v597
    %v735 = vunpack.c.l.b16 %v598
    %v736 = vunpack.c.l.b16 %v599
    %v737 = vunpack.c.l.b16 %v600
    %v738 = vunpack.c.l.b16 %v601
    %v739 = vunpack.c.l.b16 %v602
    %v740 = vunpack.c.l.b16 %v603
    %v741 = vunpack.c.l.b16 %v604
    %v742 = vunpack.c.l.b16 %v605
    %v743 = vunpack.c.l.b16 %v606
    %v744 = vunpack.c.l.b16 %v607
    %v745 = vpack.c.b16 %v730, %v729
    %v746 = vpack.c.b16 %v732, %v731
    %v747 = vpack.c.b16 %v734, %v733
    %v748 = vpack.c.b16 %v736, %v735
    %v749 = vpack.c.b16 %v738, %v737
    %v750 = vpack.c.b16 %v740, %v739
    %v751 = vpack.c.b16 %v742, %v741
    %v752 = vpack.c.b16 %v744, %v743
    %761 = vmatpush.bf16.msra.mxu0 %v615
    %762 = vmatpush.bf16.msra.mxu0 %v614
    %763 = vmatpush.bf16.msra.mxu0 %v613
    %764 = vmatpush.bf16.msra.mxu0 %v612
    %765 = vmatpush.bf16.msra.mxu0 %v611
    %766 = vmatpush.bf16.msra.mxu0 %v610
    %767 = vmatpush.bf16.msra.mxu0 %v609
    %768 = vmatpush.bf16.msra.mxu0 %v608
    %769 = vmatmul.bf16.gmra.mxu0 %v745
    %v770 = vpop.f32.mrf.mxu0
    %v771 = vadd.f32 %v636, %v770
    %v772 = vpop.f32.mrf.mxu0
    %v773 = vadd.f32 %v641, %v772
    %774 = vmatmul.bf16.gmra.mxu0 %v746
    %v775 = vpop.f32.mrf.mxu0
    %v776 = vadd.f32 %v646, %v775
    %v777 = vpop.f32.mrf.mxu0
    %v778 = vadd.f32 %v651, %v777
    %779 = vmatmul.bf16.gmra.mxu0 %v747
    %v780 = vpop.f32.mrf.mxu0
    %v781 = vadd.f32 %v656, %v780
    %v782 = vpop.f32.mrf.mxu0
    %v783 = vadd.f32 %v661, %v782
    %784 = vmatmul.bf16.gmra.mxu0 %v748
    %v785 = vpop.f32.mrf.mxu0
    %v786 = vadd.f32 %v666, %v785
    %v787 = vpop.f32.mrf.mxu0
    %v788 = vadd.f32 %v671, %v787
    %789 = vmatmul.bf16.gmra.mxu0 %v749
    %v790 = vpop.f32.mrf.mxu0
    %v791 = vadd.f32 %v676, %v790
    %v792 = vpop.f32.mrf.mxu0
    %v793 = vadd.f32 %v681, %v792
    %794 = vmatmul.bf16.gmra.mxu0 %v750
    %v795 = vpop.f32.mrf.mxu0
    %v796 = vadd.f32 %v686, %v795
    %v797 = vpop.f32.mrf.mxu0
    %v798 = vadd.f32 %v691, %v797
    %799 = vmatmul.bf16.gmra.mxu0 %v751
    %v800 = vpop.f32.mrf.mxu0
    %v801 = vadd.f32 %v696, %v800
    %v802 = vpop.f32.mrf.mxu0
    %v803 = vadd.f32 %v701, %v802
    %804 = vmatmul.bf16.gmra.mxu0 %v752
    %v805 = vpop.f32.mrf.mxu0
    %v806 = vadd.f32 %v706, %v805
    %v807 = vpop.f32.mrf.mxu0
    %v808 = vadd.f32 %v711, %v807
    %809 = vdwg.mxu0
    %v810 = vmax.f32 %v771, 0.0
    %v811 = vmax.f32 %v773, 0.0
    %v812 = vmax.f32 %v776, 0.0
    %v813 = vmax.f32 %v778, 0.0
    %v814 = vmax.f32 %v781, 0.0
    %v815 = vmax.f32 %v783, 0.0
    %v816 = vmax.f32 %v786, 0.0
    %v817 = vmax.f32 %v788, 0.0
    %v818 = vmax.f32 %v791, 0.0
    %v819 = vmax.f32 %v793, 0.0
    %v820 = vmax.f32 %v796, 0.0
    %v821 = vmax.f32 %v798, 0.0
    %v822 = vmax.f32 %v801, 0.0
    %v823 = vmax.f32 %v803, 0.0
    %v824 = vmax.f32 %v806, 0.0
    %v825 = vmax.f32 %v808, 0.0
    %s826 = scalar_lea.vmem %s2, 128
    %v827 = vld [vmem:[%s826] sm:$0xf]
    %v828 = vld [vmem:[%s826 + $0x4] sm:$0xf]
    %v829 = vld [vmem:[%s826 + $0x8] sm:$0xf]
    %v830 = vld [vmem:[%s826 + $0xc] sm:$0xf]
    %v831 = vld [vmem:[%s826 + $0x10] sm:$0xf]
    %v832 = vld [vmem:[%s826 + $0x14] sm:$0xf]
    %v833 = vld [vmem:[%s826 + $0x18] sm:$0xf]
    %v834 = vld [vmem:[%s826 + $0x1c] sm:$0xf]
    %v835 = vld [vmem:[%s826 + $0x20] sm:$0xf]
    %v836 = vld [vmem:[%s826 + $0x24] sm:$0xf]
    %v837 = vld [vmem:[%s826 + $0x28] sm:$0xf]
    %v838 = vld [vmem:[%s826 + $0x2c] sm:$0xf]
    %v839 = vld [vmem:[%s826 + $0x30] sm:$0xf]
    %v840 = vld [vmem:[%s826 + $0x34] sm:$0xf]
    %v841 = vld [vmem:[%s826 + $0x38] sm:$0xf]
    %v842 = vld [vmem:[%s826 + $0x3c] sm:$0xf]
    %v843 = vpack.c.bf16 %v811, %v810
    %v844 = vpack.c.bf16 %v813, %v812
    %v845 = vpack.c.bf16 %v815, %v814
    %v846 = vpack.c.bf16 %v817, %v816
    %v847 = vpack.c.bf16 %v819, %v818
    %v848 = vpack.c.bf16 %v821, %v820
    %v849 = vpack.c.bf16 %v823, %v822
    %v850 = vpack.c.bf16 %v825, %v824
    %s851 = scalar_lea.vmem %s3, 384
    %v852 = vld [vmem:[%s851] sm:$0xff]
    %v853 = vld [vmem:[%s851 + $0x8] sm:$0xff]
    %v854 = vld [vmem:[%s851 + $0x10] sm:$0xff]
    %v855 = vld [vmem:[%s851 + $0x18] sm:$0xff]
    %v856 = vld [vmem:[%s851 + $0x20] sm:$0xff]
    %v857 = vld [vmem:[%s851 + $0x28] sm:$0xff]
    %v858 = vld [vmem:[%s851 + $0x30] sm:$0xff]
    %v859 = vld [vmem:[%s851 + $0x38] sm:$0xff]
    %v860 = vld [vmem:[%s851 + $0x40] sm:$0xff]
    %v861 = vld [vmem:[%s851 + $0x48] sm:$0xff]
    %v862 = vld [vmem:[%s851 + $0x50] sm:$0xff]
    %v863 = vld [vmem:[%s851 + $0x58] sm:$0xff]
    %v864 = vld [vmem:[%s851 + $0x60] sm:$0xff]
    %v865 = vld [vmem:[%s851 + $0x68] sm:$0xff]
    %v866 = vld [vmem:[%s851 + $0x70] sm:$0xff]
    %v867 = vld [vmem:[%s851 + $0x78] sm:$0xff]
    %869 = vset.pattern.permute.xlu0 0
    %870 = vperm.xlu0 %869, %v852
    %v871 = vpop.permute.xlu0 %870
    %874 = vset.pattern.permute.xlu0 0
    %875 = vperm.xlu0 %874, %v853
    %v876 = vpop.permute.xlu0 %875
    %879 = vset.pattern.permute.xlu0 0
    %880 = vperm.xlu0 %879, %v854
    %v881 = vpop.permute.xlu0 %880
    %884 = vset.pattern.permute.xlu0 0
    %885 = vperm.xlu0 %884, %v855
    %v886 = vpop.permute.xlu0 %885
    %889 = vset.pattern.permute.xlu0 0
    %890 = vperm.xlu0 %889, %v856
    %v891 = vpop.permute.xlu0 %890
    %894 = vset.pattern.permute.xlu0 0
    %895 = vperm.xlu0 %894, %v857
    %v896 = vpop.permute.xlu0 %895
    %899 = vset.pattern.permute.xlu0 0
    %900 = vperm.xlu0 %899, %v858
    %v901 = vpop.permute.xlu0 %900
    %904 = vset.pattern.permute.xlu0 0
    %905 = vperm.xlu0 %904, %v859
    %v906 = vpop.permute.xlu0 %905
    %909 = vset.pattern.permute.xlu0 0
    %910 = vperm.xlu0 %909, %v860
    %v911 = vpop.permute.xlu0 %910
    %914 = vset.pattern.permute.xlu0 0
    %915 = vperm.xlu0 %914, %v861
    %v916 = vpop.permute.xlu0 %915
    %919 = vset.pattern.permute.xlu0 0
    %920 = vperm.xlu0 %919, %v862
    %v921 = vpop.permute.xlu0 %920
    %924 = vset.pattern.permute.xlu0 0
    %925 = vperm.xlu0 %924, %v863
    %v926 = vpop.permute.xlu0 %925
    %929 = vset.pattern.permute.xlu0 0
    %930 = vperm.xlu0 %929, %v864
    %v931 = vpop.permute.xlu0 %930
    %934 = vset.pattern.permute.xlu0 0
    %935 = vperm.xlu0 %934, %v865
    %v936 = vpop.permute.xlu0 %935
    %939 = vset.pattern.permute.xlu0 0
    %940 = vperm.xlu0 %939, %v866
    %v941 = vpop.permute.xlu0 %940
    %944 = vset.pattern.permute.xlu0 0
    %945 = vperm.xlu0 %944, %v867
    %v946 = vpop.permute.xlu0 %945
    %v964 = vunpack.c.l.b16 %v827
    %v965 = vunpack.c.l.b16 %v828
    %v966 = vunpack.c.l.b16 %v829
    %v967 = vunpack.c.l.b16 %v830
    %v968 = vunpack.c.l.b16 %v831
    %v969 = vunpack.c.l.b16 %v832
    %v970 = vunpack.c.l.b16 %v833
    %v971 = vunpack.c.l.b16 %v834
    %v972 = vunpack.c.l.b16 %v835
    %v973 = vunpack.c.l.b16 %v836
    %v974 = vunpack.c.l.b16 %v837
    %v975 = vunpack.c.l.b16 %v838
    %v976 = vunpack.c.l.b16 %v839
    %v977 = vunpack.c.l.b16 %v840
    %v978 = vunpack.c.l.b16 %v841
    %v979 = vunpack.c.l.b16 %v842
    %v980 = vpack.c.b16 %v965, %v964
    %v981 = vpack.c.b16 %v967, %v966
    %v982 = vpack.c.b16 %v969, %v968
    %v983 = vpack.c.b16 %v971, %v970
    %v984 = vpack.c.b16 %v973, %v972
    %v985 = vpack.c.b16 %v975, %v974
    %v986 = vpack.c.b16 %v977, %v976
    %v987 = vpack.c.b16 %v979, %v978
    %996 = vmatpush.bf16.msra.mxu0 %v850
    %997 = vmatpush.bf16.msra.mxu0 %v849
    %998 = vmatpush.bf16.msra.mxu0 %v848
    %999 = vmatpush.bf16.msra.mxu0 %v847
    %1000 = vmatpush.bf16.msra.mxu0 %v846
    %1001 = vmatpush.bf16.msra.mxu0 %v845
    %1002 = vmatpush.bf16.msra.mxu0 %v844
    %1003 = vmatpush.bf16.msra.mxu0 %v843
    %1004 = vmatmul.bf16.gmra.mxu0 %v980
    %v1005 = vpop.f32.mrf.mxu0
    %v1006 = vadd.f32 %v871, %v1005
    %v1007 = vpop.f32.mrf.mxu0
    %v1008 = vadd.f32 %v876, %v1007
    %1009 = vmatmul.bf16.gmra.mxu0 %v981
    %v1010 = vpop.f32.mrf.mxu0
    %v1011 = vadd.f32 %v881, %v1010
    %v1012 = vpop.f32.mrf.mxu0
    %v1013 = vadd.f32 %v886, %v1012
    %1014 = vmatmul.bf16.gmra.mxu0 %v982
    %v1015 = vpop.f32.mrf.mxu0
    %v1016 = vadd.f32 %v891, %v1015
    %v1017 = vpop.f32.mrf.mxu0
    %v1018 = vadd.f32 %v896, %v1017
    %1019 = vmatmul.bf16.gmra.mxu0 %v983
    %v1020 = vpop.f32.mrf.mxu0
    %v1021 = vadd.f32 %v901, %v1020
    %v1022 = vpop.f32.mrf.mxu0
    %v1023 = vadd.f32 %v906, %v1022
    %1024 = vmatmul.bf16.gmra.mxu0 %v984
    %v1025 = vpop.f32.mrf.mxu0
    %v1026 = vadd.f32 %v911, %v1025
    %v1027 = vpop.f32.mrf.mxu0
    %v1028 = vadd.f32 %v916, %v1027
    %1029 = vmatmul.bf16.gmra.mxu0 %v985
    %v1030 = vpop.f32.mrf.mxu0
    %v1031 = vadd.f32 %v921, %v1030
    %v1032 = vpop.f32.mrf.mxu0
    %v1033 = vadd.f32 %v926, %v1032
    %1034 = vmatmul.bf16.gmra.mxu0 %v986
    %v1035 = vpop.f32.mrf.mxu0
    %v1036 = vadd.f32 %v931, %v1035
    %v1037 = vpop.f32.mrf.mxu0
    %v1038 = vadd.f32 %v936, %v1037
    %1039 = vmatmul.bf16.gmra.mxu0 %v987
    %v1040 = vpop.f32.mrf.mxu0
    %v1041 = vadd.f32 %v941, %v1040
    %v1042 = vpop.f32.mrf.mxu0
    %v1043 = vadd.f32 %v946, %v1042
    %1044 = vdwg.mxu0
    %v1045 = vmax.f32 %v1006, 0.0
    %v1046 = vmax.f32 %v1008, 0.0
    %v1047 = vmax.f32 %v1011, 0.0
    %v1048 = vmax.f32 %v1013, 0.0
    %v1049 = vmax.f32 %v1016, 0.0
    %v1050 = vmax.f32 %v1018, 0.0
    %v1051 = vmax.f32 %v1021, 0.0
    %v1052 = vmax.f32 %v1023, 0.0
    %v1053 = vmax.f32 %v1026, 0.0
    %v1054 = vmax.f32 %v1028, 0.0
    %v1055 = vmax.f32 %v1031, 0.0
    %v1056 = vmax.f32 %v1033, 0.0
    %v1057 = vmax.f32 %v1036, 0.0
    %v1058 = vmax.f32 %v1038, 0.0
    %v1059 = vmax.f32 %v1041, 0.0
    %v1060 = vmax.f32 %v1043, 0.0
    %s1061 = scalar_lea.vmem %s2, 192
    %v1062 = vld [vmem:[%s1061] sm:$0xf]
    %v1063 = vld [vmem:[%s1061 + $0x4] sm:$0xf]
    %v1064 = vld [vmem:[%s1061 + $0x8] sm:$0xf]
    %v1065 = vld [vmem:[%s1061 + $0xc] sm:$0xf]
    %v1066 = vld [vmem:[%s1061 + $0x10] sm:$0xf]
    %v1067 = vld [vmem:[%s1061 + $0x14] sm:$0xf]
    %v1068 = vld [vmem:[%s1061 + $0x18] sm:$0xf]
    %v1069 = vld [vmem:[%s1061 + $0x1c] sm:$0xf]
    %v1070 = vld [vmem:[%s1061 + $0x20] sm:$0xf]
    %v1071 = vld [vmem:[%s1061 + $0x24] sm:$0xf]
    %v1072 = vld [vmem:[%s1061 + $0x28] sm:$0xf]
    %v1073 = vld [vmem:[%s1061 + $0x2c] sm:$0xf]
    %v1074 = vld [vmem:[%s1061 + $0x30] sm:$0xf]
    %v1075 = vld [vmem:[%s1061 + $0x34] sm:$0xf]
    %v1076 = vld [vmem:[%s1061 + $0x38] sm:$0xf]
    %v1077 = vld [vmem:[%s1061 + $0x3c] sm:$0xf]
    %v1078 = vpack.c.bf16 %v1046, %v1045
    %v1079 = vpack.c.bf16 %v1048, %v1047
    %v1080 = vpack.c.bf16 %v1050, %v1049
    %v1081 = vpack.c.bf16 %v1052, %v1051
    %v1082 = vpack.c.bf16 %v1054, %v1053
    %v1083 = vpack.c.bf16 %v1056, %v1055
    %v1084 = vpack.c.bf16 %v1058, %v1057
    %v1085 = vpack.c.bf16 %v1060, %v1059
    %s1086 = scalar_lea.vmem %s3, 512
    %v1087 = vld [vmem:[%s1086] sm:$0xff]
    %v1088 = vld [vmem:[%s1086 + $0x8] sm:$0xff]
    %v1089 = vld [vmem:[%s1086 + $0x10] sm:$0xff]
    %v1090 = vld [vmem:[%s1086 + $0x18] sm:$0xff]
    %v1091 = vld [vmem:[%s1086 + $0x20] sm:$0xff]
    %v1092 = vld [vmem:[%s1086 + $0x28] sm:$0xff]
    %v1093 = vld [vmem:[%s1086 + $0x30] sm:$0xff]
    %v1094 = vld [vmem:[%s1086 + $0x38] sm:$0xff]
    %v1095 = vld [vmem:[%s1086 + $0x40] sm:$0xff]
    %v1096 = vld [vmem:[%s1086 + $0x48] sm:$0xff]
    %v1097 = vld [vmem:[%s1086 + $0x50] sm:$0xff]
    %v1098 = vld [vmem:[%s1086 + $0x58] sm:$0xff]
    %v1099 = vld [vmem:[%s1086 + $0x60] sm:$0xff]
    %v1100 = vld [vmem:[%s1086 + $0x68] sm:$0xff]
    %v1101 = vld [vmem:[%s1086 + $0x70] sm:$0xff]
    %v1102 = vld [vmem:[%s1086 + $0x78] sm:$0xff]
    %1104 = vset.pattern.permute.xlu0 0
    %1105 = vperm.xlu0 %1104, %v1087
    %v1106 = vpop.permute.xlu0 %1105
    %1109 = vset.pattern.permute.xlu0 0
    %1110 = vperm.xlu0 %1109, %v1088
    %v1111 = vpop.permute.xlu0 %1110
    %1114 = vset.pattern.permute.xlu0 0
    %1115 = vperm.xlu0 %1114, %v1089
    %v1116 = vpop.permute.xlu0 %1115
    %1119 = vset.pattern.permute.xlu0 0
    %1120 = vperm.xlu0 %1119, %v1090
    %v1121 = vpop.permute.xlu0 %1120
    %1124 = vset.pattern.permute.xlu0 0
    %1125 = vperm.xlu0 %1124, %v1091
    %v1126 = vpop.permute.xlu0 %1125
    %1129 = vset.pattern.permute.xlu0 0
    %1130 = vperm.xlu0 %1129, %v1092
    %v1131 = vpop.permute.xlu0 %1130
    %1134 = vset.pattern.permute.xlu0 0
    %1135 = vperm.xlu0 %1134, %v1093
    %v1136 = vpop.permute.xlu0 %1135
    %1139 = vset.pattern.permute.xlu0 0
    %1140 = vperm.xlu0 %1139, %v1094
    %v1141 = vpop.permute.xlu0 %1140
    %1144 = vset.pattern.permute.xlu0 0
    %1145 = vperm.xlu0 %1144, %v1095
    %v1146 = vpop.permute.xlu0 %1145
    %1149 = vset.pattern.permute.xlu0 0
    %1150 = vperm.xlu0 %1149, %v1096
    %v1151 = vpop.permute.xlu0 %1150
    %1154 = vset.pattern.permute.xlu0 0
    %1155 = vperm.xlu0 %1154, %v1097
    %v1156 = vpop.permute.xlu0 %1155
    %1159 = vset.pattern.permute.xlu0 0
    %1160 = vperm.xlu0 %1159, %v1098
    %v1161 = vpop.permute.xlu0 %1160
    %1164 = vset.pattern.permute.xlu0 0
    %1165 = vperm.xlu0 %1164, %v1099
    %v1166 = vpop.permute.xlu0 %1165
    %1169 = vset.pattern.permute.xlu0 0
    %1170 = vperm.xlu0 %1169, %v1100
    %v1171 = vpop.permute.xlu0 %1170
    %1174 = vset.pattern.permute.xlu0 0
    %1175 = vperm.xlu0 %1174, %v1101
    %v1176 = vpop.permute.xlu0 %1175
    %1179 = vset.pattern.permute.xlu0 0
    %1180 = vperm.xlu0 %1179, %v1102
    %v1181 = vpop.permute.xlu0 %1180
    %v1199 = vunpack.c.l.b16 %v1062
    %v1200 = vunpack.c.l.b16 %v1063
    %v1201 = vunpack.c.l.b16 %v1064
    %v1202 = vunpack.c.l.b16 %v1065
    %v1203 = vunpack.c.l.b16 %v1066
    %v1204 = vunpack.c.l.b16 %v1067
    %v1205 = vunpack.c.l.b16 %v1068
    %v1206 = vunpack.c.l.b16 %v1069
    %v1207 = vunpack.c.l.b16 %v1070
    %v1208 = vunpack.c.l.b16 %v1071
    %v1209 = vunpack.c.l.b16 %v1072
    %v1210 = vunpack.c.l.b16 %v1073
    %v1211 = vunpack.c.l.b16 %v1074
    %v1212 = vunpack.c.l.b16 %v1075
    %v1213 = vunpack.c.l.b16 %v1076
    %v1214 = vunpack.c.l.b16 %v1077
    %v1215 = vpack.c.b16 %v1200, %v1199
    %v1216 = vpack.c.b16 %v1202, %v1201
    %v1217 = vpack.c.b16 %v1204, %v1203
    %v1218 = vpack.c.b16 %v1206, %v1205
    %v1219 = vpack.c.b16 %v1208, %v1207
    %v1220 = vpack.c.b16 %v1210, %v1209
    %v1221 = vpack.c.b16 %v1212, %v1211
    %v1222 = vpack.c.b16 %v1214, %v1213
    %1231 = vmatpush.bf16.msra.mxu0 %v1085
    %1232 = vmatpush.bf16.msra.mxu0 %v1084
    %1233 = vmatpush.bf16.msra.mxu0 %v1083
    %1234 = vmatpush.bf16.msra.mxu0 %v1082
    %1235 = vmatpush.bf16.msra.mxu0 %v1081
    %1236 = vmatpush.bf16.msra.mxu0 %v1080
    %1237 = vmatpush.bf16.msra.mxu0 %v1079
    %1238 = vmatpush.bf16.msra.mxu0 %v1078
    %1239 = vmatmul.bf16.gmra.mxu0 %v1215
    %v1240 = vpop.f32.mrf.mxu0
    %v1241 = vadd.f32 %v1106, %v1240
    %v1242 = vpop.f32.mrf.mxu0
    %v1243 = vadd.f32 %v1111, %v1242
    %1244 = vmatmul.bf16.gmra.mxu0 %v1216
    %v1245 = vpop.f32.mrf.mxu0
    %v1246 = vadd.f32 %v1116, %v1245
    %v1247 = vpop.f32.mrf.mxu0
    %v1248 = vadd.f32 %v1121, %v1247
    %1249 = vmatmul.bf16.gmra.mxu0 %v1217
    %v1250 = vpop.f32.mrf.mxu0
    %v1251 = vadd.f32 %v1126, %v1250
    %v1252 = vpop.f32.mrf.mxu0
    %v1253 = vadd.f32 %v1131, %v1252
    %1254 = vmatmul.bf16.gmra.mxu0 %v1218
    %v1255 = vpop.f32.mrf.mxu0
    %v1256 = vadd.f32 %v1136, %v1255
    %v1257 = vpop.f32.mrf.mxu0
    %v1258 = vadd.f32 %v1141, %v1257
    %1259 = vmatmul.bf16.gmra.mxu0 %v1219
    %v1260 = vpop.f32.mrf.mxu0
    %v1261 = vadd.f32 %v1146, %v1260
    %v1262 = vpop.f32.mrf.mxu0
    %v1263 = vadd.f32 %v1151, %v1262
    %1264 = vmatmul.bf16.gmra.mxu0 %v1220
    %v1265 = vpop.f32.mrf.mxu0
    %v1266 = vadd.f32 %v1156, %v1265
    %v1267 = vpop.f32.mrf.mxu0
    %v1268 = vadd.f32 %v1161, %v1267
    %1269 = vmatmul.bf16.gmra.mxu0 %v1221
    %v1270 = vpop.f32.mrf.mxu0
    %v1271 = vadd.f32 %v1166, %v1270
    %v1272 = vpop.f32.mrf.mxu0
    %v1273 = vadd.f32 %v1171, %v1272
    %1274 = vmatmul.bf16.gmra.mxu0 %v1222
    %v1275 = vpop.f32.mrf.mxu0
    %v1276 = vadd.f32 %v1176, %v1275
    %v1277 = vpop.f32.mrf.mxu0
    %v1278 = vadd.f32 %v1181, %v1277
    %1279 = vdwg.mxu0
    %v1280 = vmax.f32 %v1241, 0.0
    %v1281 = vmax.f32 %v1243, 0.0
    %v1282 = vmax.f32 %v1246, 0.0
    %v1283 = vmax.f32 %v1248, 0.0
    %v1284 = vmax.f32 %v1251, 0.0
    %v1285 = vmax.f32 %v1253, 0.0
    %v1286 = vmax.f32 %v1256, 0.0
    %v1287 = vmax.f32 %v1258, 0.0
    %v1288 = vmax.f32 %v1261, 0.0
    %v1289 = vmax.f32 %v1263, 0.0
    %v1290 = vmax.f32 %v1266, 0.0
    %v1291 = vmax.f32 %v1268, 0.0
    %v1292 = vmax.f32 %v1271, 0.0
    %v1293 = vmax.f32 %v1273, 0.0
    %v1294 = vmax.f32 %v1276, 0.0
    %v1295 = vmax.f32 %v1278, 0.0
    %s1296 = scalar_lea.vmem %s2, 256
    %v1297 = vld [vmem:[%s1296] sm:$0xf]
    %v1298 = vld [vmem:[%s1296 + $0x4] sm:$0xf]
    %v1299 = vpack.c.bf16 %v1281, %v1280
    %v1300 = vpack.c.bf16 %v1283, %v1282
    %v1301 = vpack.c.bf16 %v1285, %v1284
    %v1302 = vpack.c.bf16 %v1287, %v1286
    %v1303 = vpack.c.bf16 %v1289, %v1288
    %v1304 = vpack.c.bf16 %v1291, %v1290
    %v1305 = vpack.c.bf16 %v1293, %v1292
    %v1306 = vpack.c.bf16 %v1295, %v1294
    %s1307 = scalar_lea.vmem %s3, 640
    %v1308 = vld [vmem:[%s1307] sm:$0xff]
    %v1309 = vld [vmem:[%s1307 + $0x8] sm:$0xff]
    %1311 = vset.pattern.permute.xlu0 0
    %1312 = vperm.xlu0 %1311, %v1308
    %v1313 = vpop.permute.xlu0 %1312
    %1316 = vset.pattern.permute.xlu0 0
    %1317 = vperm.xlu0 %1316, %v1309
    %v1318 = vpop.permute.xlu0 %1317
    %v1321 = vunpack.c.l.b16 %v1297
    %v1322 = vunpack.c.l.b16 %v1298
    %v1323 = vpack.c.b16 %v1322, %v1321
    %1325 = vmatpush.bf16.msra.mxu0 %v1306
    %1326 = vmatpush.bf16.msra.mxu0 %v1305
    %1327 = vmatpush.bf16.msra.mxu0 %v1304
    %1328 = vmatpush.bf16.msra.mxu0 %v1303
    %1329 = vmatpush.bf16.msra.mxu0 %v1302
    %1330 = vmatpush.bf16.msra.mxu0 %v1301
    %1331 = vmatpush.bf16.msra.mxu0 %v1300
    %1332 = vmatpush.bf16.msra.mxu0 %v1299
    %1333 = vmatmul.bf16.gmra.mxu0 %v1323
    %v1334 = vpop.f32.mrf.mxu0
    %v1335 = vadd.f32 %v1313, %v1334
    %v1336 = vpop.f32.mrf.mxu0
    %1337 = vdwg.mxu0
    %1338 = vst [vmem:[#allocation2] sm:$0x3] %v1335
    // Predicated region
    $region18: #{tpu_custom_call.1} parent=1 // pred_check
      _
    $region19: #{tpu_custom_call.1} parent=1 // pred_check_branch
      %1340 = sbr.rel (0) target = $region21
    $region20: #{tpu_custom_call.1} parent=1 // pred_region
      %1342 = vsyncadd [#allocation3], 0
      %s1344 = sshll.u32 [#allocation2], 4
      %s1345 = int_to_ptr.vmem [resolvable:$true] %s1344
      %s1346 = sshll.u32 %s4, 4
      %s1347 = int_to_ptr.hbm [resolvable:$true] %s1346
      %1349 = dma.vmem_to_hbm [thread:$0]  %s1345, 32, %s1347, [#allocation3]
    $region21: #{tpu_custom_call.1} parent=1 // pred_fallthru
      _
    // Predicated region
    $region22: #{tpu_custom_call.1} parent=1 // pred_check
      _
    $region23: #{tpu_custom_call.1} parent=1 // pred_check_branch
      %1351 = sbr.rel (0) target = $region25
    $region24: #{tpu_custom_call.1} parent=1 // pred_region
      %1353 = dma.done [#allocation3], 32
    $region25: #{tpu_custom_call.1} parent=1 // pred_fallthru
      _
    %1354 = vsyncpa [#allocation3], 1

</llo_original>
